<compile_context>
chip_gen: v7x
topology: tpu7x:2x2x1
jax: 0.10.0
libtpu: 0.0.40
codegen_flags: <defaults>
</compile_context>

<pallas_src>
import jax
import jax.numpy as jnp
from jax import lax
from jax.experimental import pallas as pl
from jax.experimental.pallas import tpu as pltpu


def _criterion_partials_kernel(logit_ref, tgt_ref, room_ref, rcls_ref,
                               pc_ref, tc_ref, len_ref, out_ref):
    """Per-batch-block partial sums for all four loss terms.

    Views (bb = batch rows per grid step):
      logit_ref : (bb, 1, Q*P)  corner-validity logits            (bf16/f32)
      tgt_ref   : (bb, 1, Q*P)  BCE targets, padded w/ num_classes-1 (bf16/f32)
      room_ref  : (bb, C, Q)    room logits, queries on lanes      (bf16/f32)
      rcls_ref  : (bb, 1, Q)    room target classes, padded        (int32)
      pc_ref    : (bb, T, 2P)   predicted coords (matched queries) (bf16/f32)
      tc_ref    : (bb, T, 2P)   target coords                      (bf16/f32)
      len_ref   : (bb, T, 1)    valid-coordinate counts            (int32)
      out_ref   : (1, 1, 128)   [bce_sum, room_ce_sum, card_err, l1_num, l1_den, 0...]
    """
    # ---------- BCE-with-logits (stable form) + fused cardinality count ----------
    x = logit_ref[...].astype(jnp.float32)
    t = tgt_ref[...].astype(jnp.float32)
    bce = jnp.maximum(x, 0.0) - x * t + jnp.log(1.0 + jnp.exp(-jnp.abs(x)))
    bce_sum = jnp.sum(bce)

    lens = len_ref[...].astype(jnp.float32)                                   # (bb,T,1)
    card = jnp.sum(jnp.where(x > 0.0, 1.0, 0.0), axis=(1, 2), keepdims=True)  # (bb,1,1)
    tgt_len = 0.5 * jnp.sum(lens, axis=(1, 2), keepdims=True)                 # (bb,1,1)
    card_err = jnp.sum(jnp.abs(card - tgt_len))

    # ---------- softmax cross-entropy over room classes (classes on sublanes) ----
    rl = room_ref[...].astype(jnp.float32)                                    # (bb,C,Q)
    m = jnp.max(rl, axis=1, keepdims=True)
    lse = jnp.log(jnp.sum(jnp.exp(rl - m), axis=1, keepdims=True)) + m        # (bb,1,Q)
    cls_iota = lax.broadcasted_iota(jnp.int32, rl.shape, 1)
    picked = jnp.sum(jnp.where(cls_iota == rcls_ref[...], rl, 0.0))
    room_sum = jnp.sum(lse) - picked

    # ---------- masked L1 over matched polygon coordinates -----------------------
    sp = pc_ref[...].astype(jnp.float32)                                      # (bb,T,2P)
    tp = tc_ref[...].astype(jnp.float32)
    kidx = lax.broadcasted_iota(jnp.int32, sp.shape, 2)
    mask = (kidx < len_ref[...]).astype(jnp.float32)
    l1_num = jnp.sum(jnp.abs(sp - tp) * mask)
    l1_den = jnp.sum(mask)

    # ---------- pack 5 partial scalars into one unmasked 128-lane row ------------
    lane = lax.broadcasted_iota(jnp.int32, (1, 1, 128), 2)
    row = (jnp.where(lane == 0, bce_sum, 0.0)
           + jnp.where(lane == 1, room_sum, 0.0)
           + jnp.where(lane == 2, card_err, 0.0)
           + jnp.where(lane == 3, l1_num, 0.0)
           + jnp.where(lane == 4, l1_den, 0.0))
    out_ref[...] = row


def set_criterion_forward(outputs, targets, *, num_classes, semantic_classes,
                          block_bytes_budget=4 * 2**20):
    """Pure-function equivalent of SetCriterion.forward (main outputs only)."""
    pred_logits = outputs['pred_logits']            # (B, Q, P)    float (bf16/f32)
    pred_room_logits = outputs['pred_room_logits']  # (B, Q, C)    float
    pred_coords = outputs['pred_coords']            # (B, Q, P, 2) float

    labels = targets['labels']                      # (B, T, P)    float 0/1
    room_labels = targets['room_labels']            # (B, T)       int
    coords = targets['coords']                      # (B, T, 2P)   float
    lengths = targets['lengths']                    # (B, T)       int (even)

    B, Q, P = pred_logits.shape
    C = pred_room_logits.shape[-1]
    T = labels.shape[1]
    assert T <= Q and 0 <= semantic_classes - 1 < C
    QP = Q * P
    two_p = 2 * P

    # Fill values exactly as in the torch reference (torch.full(..., num_classes-1) as a
    # float BCE target; semantic_classes-1 as the CE class for unmatched queries).
    fill_label = float(num_classes - 1)
    fill_class = int(semantic_classes - 1)

    # ----- target-construction glue (tiny XLA ops; keeps narrow dtypes) -------------
    # TODO(synk): identity matching stands in for the Hungarian matcher here.
    tgt_corners = labels
    if Q > T:
        tgt_corners = jnp.pad(labels, ((0, 0), (0, Q - T), (0, 0)),
                              constant_values=fill_label)
    tgt_corners = tgt_corners.reshape(B, 1, QP)
    logits_flat = pred_logits.reshape(B, 1, QP)

    room_t = jnp.transpose(pred_room_logits, (0, 2, 1))          # (B, C, Q): Q on lanes
    room_cls = room_labels.astype(jnp.int32)
    if Q > T:
        room_cls = jnp.pad(room_cls, ((0, 0), (0, Q - T)), constant_values=fill_class)
    room_cls = room_cls.reshape(B, 1, Q)

    pc = pred_coords[:, :T].reshape(B, T, two_p)   # never DMA the unused Q-T query rows
    tc = coords.reshape(B, T, two_p)
    lens = lengths.astype(jnp.int32).reshape(B, T, 1)

    ins = (logits_flat, tgt_corners, room_t, room_cls, pc, tc, lens)

    # ----- pick a batch block so each grid step moves ~block_bytes_budget of operands
    per_batch_bytes = max(1, sum(int(a.nbytes) for a in ins) // B)
    bb = 1
    for d in range(1, B + 1):
        if (B % d == 0 and d * per_batch_bytes <= block_bytes_budget
                and (B // d) >= min(B, 2)):
            bb = d
    nblk = B // bb

    def _bspec(shp):
        return pl.BlockSpec((bb,) + tuple(shp[1:]),
                            lambda i, _n=len(shp): (i,) + (0,) * (_n - 1))

    in_specs = [_bspec(a.shape) for a in ins]
    out_specs = pl.BlockSpec((1, 1, 128), lambda i: (i, 0, 0))
    out_shape = jax.ShapeDtypeStruct((nblk, 1, 128), jnp.float32)

    step_bytes = bb * per_batch_bytes + 4 * 128
    vmem_limit = int(min(48 * 2**20, max(16 * 2**20, 4 * step_bytes)))

    flops = 10 * B * QP + (3 * C + 6) * B * Q + 6 * B * T * two_p
    transcendentals = 2 * B * QP + B * Q * (C + 1)
    bytes_accessed = sum(int(a.nbytes) for a in ins) + nblk * 128 * 4

    partials = pl.pallas_call(
        _criterion_partials_kernel,
        grid=(nblk,),
        in_specs=in_specs,
        out_specs=out_specs,
        out_shape=out_shape,
        compiler_params=pltpu.CompilerParams(
            dimension_semantics=("parallel",),
            vmem_limit_bytes=vmem_limit),
        cost_estimate=pl.CostEstimate(flops=flops,
                                      transcendentals=transcendentals,
                                      bytes_accessed=bytes_accessed),
    )(*ins)

    sums = jnp.sum(partials.reshape(nblk, 128), axis=0)
    loss_ce = sums[0] / float(B * QP)                       # BCE mean over B*Q*P
    loss_ce_room = sums[1] / float(B * Q)                   # CE mean over B*Q
    cardinality_error = sums[2] / float(B)                  # L1 mean over batch
    loss_coords = sums[3] / jnp.maximum(sums[4], 1.0)       # masked-mean L1

    return {
        'loss_ce': loss_ce,
        'loss_ce_room': loss_ce_room,
        'cardinality_error': cardinality_error,
        'loss_coords': loss_coords,
    }


if __name__ == "__main__":
    key = jax.random.PRNGKey(0)
    k1, k2, k3, k4, k5, k6, k7 = jax.random.split(key, 7)

    B, Q, P, C, T = 2, 8, 4, 6, 3          # batch, queries, corners/poly, sem classes, targets
    num_classes = 2                        # binary corner validity
    semantic_classes = C

    outputs = {
        'pred_logits': jax.random.normal(k1, (B, Q, P), jnp.float32).astype(jnp.bfloat16),
        'pred_room_logits': jax.random.normal(k2, (B, Q, C), jnp.float32).astype(jnp.bfloat16),
        'pred_coords': jax.random.uniform(k3, (B, Q, P, 2), jnp.float32).astype(jnp.bfloat16),
    }
    targets = {
        'labels': jax.random.bernoulli(k4, 0.5, (B, T, P)).astype(jnp.bfloat16),
        'room_labels': jax.random.randint(k5, (B, T), 0, C - 1, jnp.int32),
        'coords': jax.random.uniform(k6, (B, T, 2 * P), jnp.float32),
        'lengths': 2 * jax.random.randint(k7, (B, T), 1, P + 1, jnp.int32),  # even, <= 2P
    }

    losses = set_criterion_forward(outputs, targets,
                                   num_classes=num_classes,
                                   semantic_classes=semantic_classes)
    jax.block_until_ready(losses)
    print("KERNEL_OK")
</pallas_src>

<mosaic_0001>
module attributes {stable_mosaic.version = 11 : i64} {
  func.func @_criterion_partials_kernel(%arg0: i32, %arg1: memref<1x1x32xbf16, #tpu.memory_space<vmem>>, %arg2: memref<1x1x32xbf16, #tpu.memory_space<vmem>>, %arg3: memref<1x6x8xbf16, #tpu.memory_space<vmem>>, %arg4: memref<1x1x8xi32, #tpu.memory_space<vmem>>, %arg5: memref<1x3x8xbf16, #tpu.memory_space<vmem>>, %arg6: memref<1x3x8xf32, #tpu.memory_space<vmem>>, %arg7: memref<1x3x1xi32, #tpu.memory_space<vmem>>, %arg8: memref<1x1x128xf32, #tpu.memory_space<vmem>>) attributes {dimension_semantics = [#tpu.dimension_semantics<parallel>], iteration_bounds = array<i64: 2>, scalar_prefetch = 0 : i64, scratch_operands = 0 : i64, tpu.core_type = #tpu.core_type<tc>, window_params = [{transform_indices = @transform_0, window_bounds = array<i64: 1, 1, 32>}, {transform_indices = @transform_1, window_bounds = array<i64: 1, 1, 32>}, {transform_indices = @transform_2, window_bounds = array<i64: 1, 6, 8>}, {transform_indices = @transform_3, window_bounds = array<i64: 1, 1, 8>}, {transform_indices = @transform_4, window_bounds = array<i64: 1, 3, 8>}, {transform_indices = @transform_5, window_bounds = array<i64: 1, 3, 8>}, {transform_indices = @transform_6, window_bounds = array<i64: 1, 3, 1>}, {transform_indices = @transform_7, window_bounds = array<i64: 1, 1, 128>}]} {
    %c0 = arith.constant 0 : index
    %c0_0 = arith.constant 0 : index
    %c0_1 = arith.constant 0 : index
    %0 = vector.load %arg1[%c0, %c0_0, %c0_1] : memref<1x1x32xbf16, #tpu.memory_space<vmem>>, vector<1x1x32xbf16>
    %1 = arith.extf %0 : vector<1x1x32xbf16> to vector<1x1x32xf32>
    %c0_2 = arith.constant 0 : index
    %c0_3 = arith.constant 0 : index
    %c0_4 = arith.constant 0 : index
    %2 = vector.load %arg2[%c0_2, %c0_3, %c0_4] : memref<1x1x32xbf16, #tpu.memory_space<vmem>>, vector<1x1x32xbf16>
    %3 = arith.extf %2 : vector<1x1x32xbf16> to vector<1x1x32xf32>
    %cst = arith.constant 0.000000e+00 : f32
    %4 = vector.broadcast %cst : f32 to vector<1x1x32xf32>
    %5 = arith.maximumf %1, %4 : vector<1x1x32xf32>
    %6 = arith.mulf %1, %3 : vector<1x1x32xf32>
    %7 = arith.subf %5, %6 : vector<1x1x32xf32>
    %8 = math.absf %1 : vector<1x1x32xf32>
    %cst_5 = arith.constant 0.000000e+00 : f32
    %9 = vector.broadcast %cst_5 : f32 to vector<1x1x32xf32>
    %10 = arith.subf %9, %8 : vector<1x1x32xf32>
    %11 = math.exp %10 : vector<1x1x32xf32>
    %cst_6 = arith.constant 1.000000e+00 : f32
    %12 = vector.broadcast %cst_6 : f32 to vector<1x1x32xf32>
    %13 = arith.addf %12, %11 : vector<1x1x32xf32>
    %14 = math.log %13 : vector<1x1x32xf32>
    %15 = arith.addf %7, %14 : vector<1x1x32xf32>
    %16 = vector.shape_cast %15 : vector<1x1x32xf32> to vector<1x1x1x32xf32>
    %cst_7 = arith.constant dense<0.000000e+00> : vector<1xf32>
    %17 = vector.multi_reduction <add>, %16, %cst_7 [1, 2, 3] : vector<1x1x1x32xf32> to vector<1xf32>
    %18 = vector.shape_cast %17 : vector<1xf32> to vector<1x1x1x1xf32>
    %19 = vector.extract %18[0, 0, 0, 0] : f32 from vector<1x1x1x1xf32>
    %c0_8 = arith.constant 0 : index
    %c0_9 = arith.constant 0 : index
    %c0_10 = arith.constant 0 : index
    %20 = vector.load %arg7[%c0_8, %c0_9, %c0_10] : memref<1x3x1xi32, #tpu.memory_space<vmem>>, vector<1x3x1xi32>
    %21 = arith.sitofp %20 : vector<1x3x1xi32> to vector<1x3x1xf32>
    %cst_11 = arith.constant 0.000000e+00 : f32
    %22 = vector.broadcast %cst_11 : f32 to vector<1x1x32xf32>
    %23 = arith.cmpf ogt, %1, %22 : vector<1x1x32xf32>
    %cst_12 = arith.constant 1.000000e+00 : f32
    %cst_13 = arith.constant 0.000000e+00 : f32
    %24 = vector.broadcast %cst_12 : f32 to vector<1x1x32xf32>
    %25 = vector.broadcast %cst_13 : f32 to vector<1x1x32xf32>
    %26 = arith.select %23, %24, %25 : vector<1x1x32xi1>, vector<1x1x32xf32>
    %cst_14 = arith.constant dense<0.000000e+00> : vector<1xf32>
    %27 = vector.multi_reduction <add>, %26, %cst_14 [1, 2] : vector<1x1x32xf32> to vector<1xf32>
    %28 = vector.shape_cast %27 : vector<1xf32> to vector<1x1x1xf32>
    %cst_15 = arith.constant dense<0.000000e+00> : vector<1xf32>
    %29 = vector.multi_reduction <add>, %21, %cst_15 [1, 2] : vector<1x3x1xf32> to vector<1xf32>
    %30 = vector.shape_cast %29 : vector<1xf32> to vector<1x1x1xf32>
    %cst_16 = arith.constant 5.000000e-01 : f32
    %31 = vector.broadcast %cst_16 : f32 to vector<1x1x1xf32>
    %32 = arith.mulf %31, %30 : vector<1x1x1xf32>
    %33 = arith.subf %28, %32 : vector<1x1x1xf32>
    %34 = math.absf %33 : vector<1x1x1xf32>
    %35 = vector.shape_cast %34 : vector<1x1x1xf32> to vector<1x1x1x1xf32>
    %cst_17 = arith.constant dense<0.000000e+00> : vector<1xf32>
    %36 = vector.multi_reduction <add>, %35, %cst_17 [1, 2, 3] : vector<1x1x1x1xf32> to vector<1xf32>
    %37 = vector.shape_cast %36 : vector<1xf32> to vector<1x1x1x1xf32>
    %38 = vector.extract %37[0, 0, 0, 0] : f32 from vector<1x1x1x1xf32>
    %c0_18 = arith.constant 0 : index
    %c0_19 = arith.constant 0 : index
    %c0_20 = arith.constant 0 : index
    %39 = vector.load %arg3[%c0_18, %c0_19, %c0_20] : memref<1x6x8xbf16, #tpu.memory_space<vmem>>, vector<1x6x8xbf16>
    %40 = arith.extf %39 : vector<1x6x8xbf16> to vector<1x6x8xf32>
    %cst_21 = arith.constant dense<0xFF800000> : vector<1x8xf32>
    %41 = vector.multi_reduction <maximumf>, %40, %cst_21 [1] : vector<1x6x8xf32> to vector<1x8xf32>
    %42 = vector.shape_cast %41 : vector<1x8xf32> to vector<1x1x8xf32>
    %43 = vector.broadcast %42 : vector<1x1x8xf32> to vector<1x6x8xf32>
    %44 = arith.subf %40, %43 : vector<1x6x8xf32>
    %45 = math.exp %44 : vector<1x6x8xf32>
    %cst_22 = arith.constant dense<0.000000e+00> : vector<1x8xf32>
    %46 = vector.multi_reduction <add>, %45, %cst_22 [1] : vector<1x6x8xf32> to vector<1x8xf32>
    %47 = vector.shape_cast %46 : vector<1x8xf32> to vector<1x1x8xf32>
    %48 = math.log %47 : vector<1x1x8xf32>
    %49 = arith.addf %48, %42 : vector<1x1x8xf32>
    %50 = tpu.iota {dimensions = array<i32: 1>} : vector<1x6x8xi32>
    %c0_23 = arith.constant 0 : index
    %c0_24 = arith.constant 0 : index
    %c0_25 = arith.constant 0 : index
    %51 = vector.load %arg4[%c0_23, %c0_24, %c0_25] : memref<1x1x8xi32, #tpu.memory_space<vmem>>, vector<1x1x8xi32>
    %52 = vector.broadcast %51 : vector<1x1x8xi32> to vector<1x6x8xi32>
    %53 = arith.cmpi eq, %50, %52 : vector<1x6x8xi32>
    %cst_26 = arith.constant 0.000000e+00 : f32
    %54 = vector.broadcast %cst_26 : f32 to vector<1x6x8xf32>
    %55 = arith.select %53, %40, %54 : vector<1x6x8xi1>, vector<1x6x8xf32>
    %56 = vector.shape_cast %55 : vector<1x6x8xf32> to vector<1x1x6x8xf32>
    %cst_27 = arith.constant dense<0.000000e+00> : vector<1xf32>
    %57 = vector.multi_reduction <add>, %56, %cst_27 [1, 2, 3] : vector<1x1x6x8xf32> to vector<1xf32>
    %58 = vector.shape_cast %57 : vector<1xf32> to vector<1x1x1x1xf32>
    %59 = vector.extract %58[0, 0, 0, 0] : f32 from vector<1x1x1x1xf32>
    %60 = vector.shape_cast %49 : vector<1x1x8xf32> to vector<1x1x1x8xf32>
    %cst_28 = arith.constant dense<0.000000e+00> : vector<1xf32>
    %61 = vector.multi_reduction <add>, %60, %cst_28 [1, 2, 3] : vector<1x1x1x8xf32> to vector<1xf32>
    %62 = vector.shape_cast %61 : vector<1xf32> to vector<1x1x1x1xf32>
    %63 = vector.extract %62[0, 0, 0, 0] : f32 from vector<1x1x1x1xf32>
    %64 = arith.subf %63, %59 : f32
    %c0_29 = arith.constant 0 : index
    %c0_30 = arith.constant 0 : index
    %c0_31 = arith.constant 0 : index
    %65 = vector.load %arg5[%c0_29, %c0_30, %c0_31] : memref<1x3x8xbf16, #tpu.memory_space<vmem>>, vector<1x3x8xbf16>
    %66 = arith.extf %65 : vector<1x3x8xbf16> to vector<1x3x8xf32>
    %c0_32 = arith.constant 0 : index
    %c0_33 = arith.constant 0 : index
    %c0_34 = arith.constant 0 : index
    %67 = vector.load %arg6[%c0_32, %c0_33, %c0_34] : memref<1x3x8xf32, #tpu.memory_space<vmem>>, vector<1x3x8xf32>
    %68 = tpu.iota {dimensions = array<i32: 2>} : vector<1x3x8xi32>
    %c0_35 = arith.constant 0 : index
    %c0_36 = arith.constant 0 : index
    %c0_37 = arith.constant 0 : index
    %69 = vector.load %arg7[%c0_35, %c0_36, %c0_37] : memref<1x3x1xi32, #tpu.memory_space<vmem>>, vector<1x3x1xi32>
    %70 = vector.broadcast %69 : vector<1x3x1xi32> to vector<1x3x8xi32>
    %71 = arith.cmpi slt, %68, %70 : vector<1x3x8xi32>
    %72 = arith.extui %71 : vector<1x3x8xi1> to vector<1x3x8xi32>
    %73 = arith.sitofp %72 : vector<1x3x8xi32> to vector<1x3x8xf32>
    %74 = arith.subf %66, %67 : vector<1x3x8xf32>
    %75 = math.absf %74 : vector<1x3x8xf32>
    %76 = arith.mulf %75, %73 : vector<1x3x8xf32>
    %77 = vector.shape_cast %76 : vector<1x3x8xf32> to vector<1x1x3x8xf32>
    %cst_38 = arith.constant dense<0.000000e+00> : vector<1xf32>
    %78 = vector.multi_reduction <add>, %77, %cst_38 [1, 2, 3] : vector<1x1x3x8xf32> to vector<1xf32>
    %79 = vector.shape_cast %78 : vector<1xf32> to vector<1x1x1x1xf32>
    %80 = vector.extract %79[0, 0, 0, 0] : f32 from vector<1x1x1x1xf32>
    %81 = vector.shape_cast %73 : vector<1x3x8xf32> to vector<1x1x3x8xf32>
    %cst_39 = arith.constant dense<0.000000e+00> : vector<1xf32>
    %82 = vector.multi_reduction <add>, %81, %cst_39 [1, 2, 3] : vector<1x1x3x8xf32> to vector<1xf32>
    %83 = vector.shape_cast %82 : vector<1xf32> to vector<1x1x1x1xf32>
    %84 = vector.extract %83[0, 0, 0, 0] : f32 from vector<1x1x1x1xf32>
    %85 = tpu.iota {dimensions = array<i32: 2>} : vector<1x1x128xi32>
    %c0_i32 = arith.constant 0 : i32
    %86 = vector.broadcast %c0_i32 : i32 to vector<1x1x128xi32>
    %87 = arith.cmpi eq, %85, %86 : vector<1x1x128xi32>
    %cst_40 = arith.constant 0.000000e+00 : f32
    %88 = vector.broadcast %19 : f32 to vector<1x1x128xf32>
    %89 = vector.broadcast %cst_40 : f32 to vector<1x1x128xf32>
    %90 = arith.select %87, %88, %89 : vector<1x1x128xi1>, vector<1x1x128xf32>
    %c1_i32 = arith.constant 1 : i32
    %91 = vector.broadcast %c1_i32 : i32 to vector<1x1x128xi32>
    %92 = arith.cmpi eq, %85, %91 : vector<1x1x128xi32>
    %cst_41 = arith.constant 0.000000e+00 : f32
    %93 = vector.broadcast %64 : f32 to vector<1x1x128xf32>
    %94 = vector.broadcast %cst_41 : f32 to vector<1x1x128xf32>
    %95 = arith.select %92, %93, %94 : vector<1x1x128xi1>, vector<1x1x128xf32>
    %96 = arith.addf %90, %95 : vector<1x1x128xf32>
    %c2_i32 = arith.constant 2 : i32
    %97 = vector.broadcast %c2_i32 : i32 to vector<1x1x128xi32>
    %98 = arith.cmpi eq, %85, %97 : vector<1x1x128xi32>
    %cst_42 = arith.constant 0.000000e+00 : f32
    %99 = vector.broadcast %38 : f32 to vector<1x1x128xf32>
    %100 = vector.broadcast %cst_42 : f32 to vector<1x1x128xf32>
    %101 = arith.select %98, %99, %100 : vector<1x1x128xi1>, vector<1x1x128xf32>
    %102 = arith.addf %96, %101 : vector<1x1x128xf32>
    %c3_i32 = arith.constant 3 : i32
    %103 = vector.broadcast %c3_i32 : i32 to vector<1x1x128xi32>
    %104 = arith.cmpi eq, %85, %103 : vector<1x1x128xi32>
    %cst_43 = arith.constant 0.000000e+00 : f32
    %105 = vector.broadcast %80 : f32 to vector<1x1x128xf32>
    %106 = vector.broadcast %cst_43 : f32 to vector<1x1x128xf32>
    %107 = arith.select %104, %105, %106 : vector<1x1x128xi1>, vector<1x1x128xf32>
    %108 = arith.addf %102, %107 : vector<1x1x128xf32>
    %c4_i32 = arith.constant 4 : i32
    %109 = vector.broadcast %c4_i32 : i32 to vector<1x1x128xi32>
    %110 = arith.cmpi eq, %85, %109 : vector<1x1x128xi32>
    %cst_44 = arith.constant 0.000000e+00 : f32
    %111 = vector.broadcast %84 : f32 to vector<1x1x128xf32>
    %112 = vector.broadcast %cst_44 : f32 to vector<1x1x128xf32>
    %113 = arith.select %110, %111, %112 : vector<1x1x128xi1>, vector<1x1x128xf32>
    %114 = arith.addf %108, %113 : vector<1x1x128xf32>
    %c0_45 = arith.constant 0 : index
    %c0_46 = arith.constant 0 : index
    %c0_47 = arith.constant 0 : index
    %115 = vector.load %arg8[%c0_45, %c0_46, %c0_47] : memref<1x1x128xf32, #tpu.memory_space<vmem>>, vector<1x1x128xf32>
    tpu.vector_store %arg8[%c0_45, %c0_46, %c0_47], %114 {strides = array<i32>} : memref<1x1x128xf32, #tpu.memory_space<vmem>>, vector<1x1x128xf32>,
    return
  }
  func.func @transform_0(%arg0: i32) -> (i32, i32, i32) {
    %c0_i32 = arith.constant 0 : i32
    %c0_i32_0 = arith.constant 0 : i32
    %c0_i32_1 = arith.constant 0 : i32
    return %arg0, %c0_i32, %c0_i32_0 : i32, i32, i32
  }
  func.func @transform_1(%arg0: i32) -> (i32, i32, i32) {
    %c0_i32 = arith.constant 0 : i32
    %c0_i32_0 = arith.constant 0 : i32
    %c0_i32_1 = arith.constant 0 : i32
    return %arg0, %c0_i32, %c0_i32_0 : i32, i32, i32
  }
  func.func @transform_2(%arg0: i32) -> (i32, i32, i32) {
    %c0_i32 = arith.constant 0 : i32
    %c0_i32_0 = arith.constant 0 : i32
    %c0_i32_1 = arith.constant 0 : i32
    return %arg0, %c0_i32, %c0_i32_0 : i32, i32, i32
  }
  func.func @transform_3(%arg0: i32) -> (i32, i32, i32) {
    %c0_i32 = arith.constant 0 : i32
    %c0_i32_0 = arith.constant 0 : i32
    %c0_i32_1 = arith.constant 0 : i32
    return %arg0, %c0_i32, %c0_i32_0 : i32, i32, i32
  }
  func.func @transform_4(%arg0: i32) -> (i32, i32, i32) {
    %c0_i32 = arith.constant 0 : i32
    %c0_i32_0 = arith.constant 0 : i32
    %c0_i32_1 = arith.constant 0 : i32
    return %arg0, %c0_i32, %c0_i32_0 : i32, i32, i32
  }
  func.func @transform_5(%arg0: i32) -> (i32, i32, i32) {
    %c0_i32 = arith.constant 0 : i32
    %c0_i32_0 = arith.constant 0 : i32
    %c0_i32_1 = arith.constant 0 : i32
    return %arg0, %c0_i32, %c0_i32_0 : i32, i32, i32
  }
  func.func @transform_6(%arg0: i32) -> (i32, i32, i32) {
    %c0_i32 = arith.constant 0 : i32
    %c0_i32_0 = arith.constant 0 : i32
    %c0_i32_1 = arith.constant 0 : i32
    return %arg0, %c0_i32, %c0_i32_0 : i32, i32, i32
  }
  func.func @transform_7(%arg0: i32) -> (i32, i32, i32) {
    %c0_i32 = arith.constant 0 : i32
    %c0_i32_0 = arith.constant 0 : i32
    %c0_i32_1 = arith.constant 0 : i32
    return %arg0, %c0_i32, %c0_i32_0 : i32, i32, i32
  }
}

</mosaic_0001>

<llo_original>
// kernel: tpu_custom_call.1
$region0: #{tpu_custom_call.1}
  #allocation0 [shape = 'u32[]', space=smem, size = 0x4, offset = 0x4, fixed_abs, tag = 'smem constant byte address 0x4 - core index']
  #allocation1 [shape = 'u32[144,128]{1,0:T(1,128)}', space=vmem, size = 0x12000, scoped, tag = 'internal scratch']
  %s0 = inlined_call_operand.vmem [shape: bf16[2,1,32], index: 0, kind: input, shape index: {}]
  %s1 = inlined_call_operand.vmem [shape: bf16[2,1,32], index: 1, kind: input, shape index: {}]
  %s2 = inlined_call_operand.vmem [shape: bf16[2,6,8], index: 2, kind: input, shape index: {}]
  %s3 = inlined_call_operand.vmem [shape: s32[2,1,8], index: 3, kind: input, shape index: {}]
  %s4 = inlined_call_operand.vmem [shape: bf16[2,3,8], index: 4, kind: input, shape index: {}]
  %s5 = inlined_call_operand.vmem [shape: f32[2,3,8], index: 5, kind: input, shape index: {}]
  %s6 = inlined_call_operand.vmem [shape: s32[2,3,1], index: 6, kind: input, shape index: {}]
  %s7 = inlined_call_operand.hbm [shape: f32[2,1,128], index: 7, kind: output, shape index: {}]
  %s8 = sld [smem:[#allocation0]]
  $region61: #{tpu_custom_call.1} parent=0
    _
  %s10 = ssub.s32 1, %s8
  %s11 = scalar_select 0, %s10, %s8
  $region1: #{tpu_custom_call.1} parent=0
    #allocation2 [shape = 'u8[1024]{0}', space=vmem, size = 0x400, scoped, tag = 'output window, operand 0']
    #allocation3 [shape = 's32[2]{0}', space=sflag, size = 0x8, scoped, tag = 'scoped memory for tpu_custom_call.1']
    %12 = vsyncpa [#allocation3], 0
    %s13 = scalar_lea.sflag [#allocation3], 1
    %14 = vsyncpa %s13, 0
    loop: start=0, step=1, limit=4
    $region2: #{tpu_custom_call.1} parent=1 // loop_pre_header
      _
    $region3: #{tpu_custom_call.1} parent=1 // loop_header
      %s16 = sphi 0, %s20
      %p17 = scmp.ge.s32.totalorder %s16, 4
      %s26 = sphi 0, %s28
      %s29 = sphi 0, %s26
      %s30 = sphi 0, %s29
      %s46 = sphi 0, %s30
      %s52 = sphi 0, %s54
      %s55 = sphi 0, %s52
      %s56 = sphi 0, %s55
      %s72 = sphi 0, %s56
      %s78 = sphi 0, %s80
      %s81 = sphi 0, %s78
      %s82 = sphi 0, %s81
      %s98 = sphi 0, %s82
      %s104 = sphi 0, %s106
      %s107 = sphi 0, %s104
      %s108 = sphi 0, %s107
      %s124 = sphi 0, %s108
      %s130 = sphi 0, %s132
      %s133 = sphi 0, %s130
      %s134 = sphi 0, %s133
      %s150 = sphi 0, %s134
      %s156 = sphi 0, %s158
      %s159 = sphi 0, %s156
      %s160 = sphi 0, %s159
      %s176 = sphi 0, %s160
      %s182 = sphi 0, %s184
      %s185 = sphi 0, %s182
      %s186 = sphi 0, %s185
      %s202 = sphi 0, %s186
      %s208 = sphi 0, %s210
      %s211 = sphi 0, %s208
      %s212 = sphi 0, %s211
      %s228 = sphi 0, %s212
    $region4: #{tpu_custom_call.1} parent=1 // loop_header_branch
      %19 = sbr.rel (%p17) target = $region8
    $region5: #{tpu_custom_call.1} parent=1 // loop_body
      %s21 = ssub.s32 %s16, 1
      %s22 = ssub.s32 %s16, 2
      %s23 = sadd.s32 %s16, 1
      %s24 = ssub.s32 %s16, %s23
      %p25 = scmp.eq.s32.totalorder %s24, 0
      %s27 = sadd.s32 %s26, 1
      %s28 = scalar_select %p25, %s26, %s27
      %p31 = pneg %p25
      %p32 = scmp.eq.s32.totalorder %s16, 1
      %p33 = por %p31, %p32
      %p34 = scmp.ne.s32.totalorder %s26, %s29
      %p35 = scmp.eq.s32.totalorder %s16, 0
      %p36 = por %p34, %p35
      %p37 = scmp.ne.s32.totalorder %s26, %s29
      %p38 = scmp.eq.s32.totalorder %s21, 1
      %p39 = por %p37, %p38
      %p40 = scmp.ne.s32.totalorder %s29, %s30
      %p41 = scmp.eq.s32.totalorder %s21, 0
      %p42 = por %p40, %p41
      %p43 = scmp.ne.s32.totalorder %s29, %s30
      %p44 = scmp.eq.s32.totalorder %s22, 1
      %p45 = por %p43, %p44
      %p47 = scmp.ne.s32.totalorder %s30, %s46
      %p48 = scmp.eq.s32.totalorder %s22, 0
      %p49 = por %p47, %p48
      %s50 = ssub.s32 %s16, %s23
      %p51 = scmp.eq.s32.totalorder %s50, 0
      %s53 = sadd.s32 %s52, 1
      %s54 = scalar_select %p51, %s52, %s53
      %p57 = pneg %p51
      %p58 = scmp.eq.s32.totalorder %s16, 1
      %p59 = por %p57, %p58
      %p60 = scmp.ne.s32.totalorder %s52, %s55
      %p61 = scmp.eq.s32.totalorder %s16, 0
      %p62 = por %p60, %p61
      %p63 = scmp.ne.s32.totalorder %s52, %s55
      %p64 = scmp.eq.s32.totalorder %s21, 1
      %p65 = por %p63, %p64
      %p66 = scmp.ne.s32.totalorder %s55, %s56
      %p67 = scmp.eq.s32.totalorder %s21, 0
      %p68 = por %p66, %p67
      %p69 = scmp.ne.s32.totalorder %s55, %s56
      %p70 = scmp.eq.s32.totalorder %s22, 1
      %p71 = por %p69, %p70
      %p73 = scmp.ne.s32.totalorder %s56, %s72
      %p74 = scmp.eq.s32.totalorder %s22, 0
      %p75 = por %p73, %p74
      %s76 = ssub.s32 %s16, %s23
      %p77 = scmp.eq.s32.totalorder %s76, 0
      %s79 = sadd.s32 %s78, 1
      %s80 = scalar_select %p77, %s78, %s79
      %p83 = pneg %p77
      %p84 = scmp.eq.s32.totalorder %s16, 1
      %p85 = por %p83, %p84
      %p86 = scmp.ne.s32.totalorder %s78, %s81
      %p87 = scmp.eq.s32.totalorder %s16, 0
      %p88 = por %p86, %p87
      %p89 = scmp.ne.s32.totalorder %s78, %s81
      %p90 = scmp.eq.s32.totalorder %s21, 1
      %p91 = por %p89, %p90
      %p92 = scmp.ne.s32.totalorder %s81, %s82
      %p93 = scmp.eq.s32.totalorder %s21, 0
      %p94 = por %p92, %p93
      %p95 = scmp.ne.s32.totalorder %s81, %s82
      %p96 = scmp.eq.s32.totalorder %s22, 1
      %p97 = por %p95, %p96
      %p99 = scmp.ne.s32.totalorder %s82, %s98
      %p100 = scmp.eq.s32.totalorder %s22, 0
      %p101 = por %p99, %p100
      %s102 = ssub.s32 %s16, %s23
      %p103 = scmp.eq.s32.totalorder %s102, 0
      %s105 = sadd.s32 %s104, 1
      %s106 = scalar_select %p103, %s104, %s105
      %p109 = pneg %p103
      %p110 = scmp.eq.s32.totalorder %s16, 1
      %p111 = por %p109, %p110
      %p112 = scmp.ne.s32.totalorder %s104, %s107
      %p113 = scmp.eq.s32.totalorder %s16, 0
      %p114 = por %p112, %p113
      %p115 = scmp.ne.s32.totalorder %s104, %s107
      %p116 = scmp.eq.s32.totalorder %s21, 1
      %p117 = por %p115, %p116
      %p118 = scmp.ne.s32.totalorder %s107, %s108
      %p119 = scmp.eq.s32.totalorder %s21, 0
      %p120 = por %p118, %p119
      %p121 = scmp.ne.s32.totalorder %s107, %s108
      %p122 = scmp.eq.s32.totalorder %s22, 1
      %p123 = por %p121, %p122
      %p125 = scmp.ne.s32.totalorder %s108, %s124
      %p126 = scmp.eq.s32.totalorder %s22, 0
      %p127 = por %p125, %p126
      %s128 = ssub.s32 %s16, %s23
      %p129 = scmp.eq.s32.totalorder %s128, 0
      %s131 = sadd.s32 %s130, 1
      %s132 = scalar_select %p129, %s130, %s131
      %p135 = pneg %p129
      %p136 = scmp.eq.s32.totalorder %s16, 1
      %p137 = por %p135, %p136
      %p138 = scmp.ne.s32.totalorder %s130, %s133
      %p139 = scmp.eq.s32.totalorder %s16, 0
      %p140 = por %p138, %p139
      %p141 = scmp.ne.s32.totalorder %s130, %s133
      %p142 = scmp.eq.s32.totalorder %s21, 1
      %p143 = por %p141, %p142
      %p144 = scmp.ne.s32.totalorder %s133, %s134
      %p145 = scmp.eq.s32.totalorder %s21, 0
      %p146 = por %p144, %p145
      %p147 = scmp.ne.s32.totalorder %s133, %s134
      %p148 = scmp.eq.s32.totalorder %s22, 1
      %p149 = por %p147, %p148
      %p151 = scmp.ne.s32.totalorder %s134, %s150
      %p152 = scmp.eq.s32.totalorder %s22, 0
      %p153 = por %p151, %p152
      %s154 = ssub.s32 %s16, %s23
      %p155 = scmp.eq.s32.totalorder %s154, 0
      %s157 = sadd.s32 %s156, 1
      %s158 = scalar_select %p155, %s156, %s157
      %p161 = pneg %p155
      %p162 = scmp.eq.s32.totalorder %s16, 1
      %p163 = por %p161, %p162
      %p164 = scmp.ne.s32.totalorder %s156, %s159
      %p165 = scmp.eq.s32.totalorder %s16, 0
      %p166 = por %p164, %p165
      %p167 = scmp.ne.s32.totalorder %s156, %s159
      %p168 = scmp.eq.s32.totalorder %s21, 1
      %p169 = por %p167, %p168
      %p170 = scmp.ne.s32.totalorder %s159, %s160
      %p171 = scmp.eq.s32.totalorder %s21, 0
      %p172 = por %p170, %p171
      %p173 = scmp.ne.s32.totalorder %s159, %s160
      %p174 = scmp.eq.s32.totalorder %s22, 1
      %p175 = por %p173, %p174
      %p177 = scmp.ne.s32.totalorder %s160, %s176
      %p178 = scmp.eq.s32.totalorder %s22, 0
      %p179 = por %p177, %p178
      %s180 = ssub.s32 %s16, %s23
      %p181 = scmp.eq.s32.totalorder %s180, 0
      %s183 = sadd.s32 %s182, 1
      %s184 = scalar_select %p181, %s182, %s183
      %p187 = pneg %p181
      %p188 = scmp.eq.s32.totalorder %s16, 1
      %p189 = por %p187, %p188
      %p190 = scmp.ne.s32.totalorder %s182, %s185
      %p191 = scmp.eq.s32.totalorder %s16, 0
      %p192 = por %p190, %p191
      %p193 = scmp.ne.s32.totalorder %s182, %s185
      %p194 = scmp.eq.s32.totalorder %s21, 1
      %p195 = por %p193, %p194
      %p196 = scmp.ne.s32.totalorder %s185, %s186
      %p197 = scmp.eq.s32.totalorder %s21, 0
      %p198 = por %p196, %p197
      %p199 = scmp.ne.s32.totalorder %s185, %s186
      %p200 = scmp.eq.s32.totalorder %s22, 1
      %p201 = por %p199, %p200
      %p203 = scmp.ne.s32.totalorder %s186, %s202
      %p204 = scmp.eq.s32.totalorder %s22, 0
      %p205 = por %p203, %p204
      %s206 = ssub.s32 %s16, %s23
      %p207 = scmp.eq.s32.totalorder %s206, 0
      %s209 = sadd.s32 %s208, 1
      %s210 = scalar_select %p207, %s208, %s209
      %p213 = pneg %p207
      %p214 = scmp.eq.s32.totalorder %s16, 1
      %p215 = por %p213, %p214
      %p216 = scmp.ne.s32.totalorder %s208, %s211
      %p217 = scmp.eq.s32.totalorder %s16, 0
      %p218 = por %p216, %p217
      %p219 = scmp.ne.s32.totalorder %s208, %s211
      %p220 = scmp.eq.s32.totalorder %s21, 1
      %p221 = por %p219, %p220
      %p222 = scmp.ne.s32.totalorder %s211, %s212
      %p223 = scmp.eq.s32.totalorder %s21, 0
      %p224 = por %p222, %p223
      %p225 = scmp.ne.s32.totalorder %s211, %s212
      %p226 = scmp.eq.s32.totalorder %s22, 1
      %p227 = por %p225, %p226
      %p229 = scmp.ne.s32.totalorder %s212, %s228
      %p230 = scmp.eq.s32.totalorder %s22, 0
      %p231 = por %p229, %p230
      %p232 = scmp.le.s32.totalorder 1, %s16
      %p233 = scmp.lt.s32.totalorder %s16, 3
      %p234 = pnand %p232, %p233
      %p235 = pneg %p234
      // Predicated region
      $region9: #{tpu_custom_call.1} parent=5 // pred_check
        _
      $region10: #{tpu_custom_call.1} parent=5 // pred_check_branch
        %237 = sbr.rel (%p234) target = $region12
      $region11: #{tpu_custom_call.1} parent=5 // pred_region
        %s238 = ssub.s32 %s16, 1
      $region12: #{tpu_custom_call.1} parent=5 // pred_fallthru
        _
      %p239 = scmp.lt.s32.totalorder %s16, 2
      // Predicated region
      $region13: #{tpu_custom_call.1} parent=5 // pred_check
        %p240 = pneg %p239
      $region14: #{tpu_custom_call.1} parent=5 // pred_check_branch
        %242 = sbr.rel (%p240) target = $region16
      $region15: #{tpu_custom_call.1} parent=5 // pred_region
        // Predicated region
        $region17: #{tpu_custom_call.1} parent=15 // pred_check
          %p243 = pneg %p36
        $region18: #{tpu_custom_call.1} parent=15 // pred_check_branch
          %245 = sbr.rel (%p243) target = $region20
        $region19: #{tpu_custom_call.1} parent=15 // pred_region
          %p246 = scmp.lt.s32.totalorder %s16, 1
          %s247 = scalar_select %p246, %s16, 1
          %s248 = scalar_lea.vmem %s0, %s247
        $region20: #{tpu_custom_call.1} parent=15 // pred_fallthru
          _
        // Predicated region
        $region21: #{tpu_custom_call.1} parent=15 // pred_check
          %p249 = pneg %p62
        $region22: #{tpu_custom_call.1} parent=15 // pred_check_branch
          %251 = sbr.rel (%p249) target = $region24
        $region23: #{tpu_custom_call.1} parent=15 // pred_region
          %p252 = scmp.lt.s32.totalorder %s16, 1
          %s253 = scalar_select %p252, %s16, 1
          %s254 = scalar_lea.vmem %s1, %s253
        $region24: #{tpu_custom_call.1} parent=15 // pred_fallthru
          _
        // Predicated region
        $region25: #{tpu_custom_call.1} parent=15 // pred_check
          %p255 = pneg %p88
        $region26: #{tpu_custom_call.1} parent=15 // pred_check_branch
          %257 = sbr.rel (%p255) target = $region28
        $region27: #{tpu_custom_call.1} parent=15 // pred_region
          %p258 = scmp.lt.s32.totalorder %s16, 1
          %s259 = scalar_select %p258, %s16, 1
          %s260 = smul.addr %s259, 4
          %s261 = scalar_lea.vmem %s2, %s260
        $region28: #{tpu_custom_call.1} parent=15 // pred_fallthru
          _
        // Predicated region
        $region29: #{tpu_custom_call.1} parent=15 // pred_check
          %p262 = pneg %p114
        $region30: #{tpu_custom_call.1} parent=15 // pred_check_branch
          %264 = sbr.rel (%p262) target = $region32
        $region31: #{tpu_custom_call.1} parent=15 // pred_region
          %p265 = scmp.lt.s32.totalorder %s16, 1
          %s266 = scalar_select %p265, %s16, 1
          %s267 = scalar_lea.vmem %s3, %s266
        $region32: #{tpu_custom_call.1} parent=15 // pred_fallthru
          _
        // Predicated region
        $region33: #{tpu_custom_call.1} parent=15 // pred_check
          %p268 = pneg %p140
        $region34: #{tpu_custom_call.1} parent=15 // pred_check_branch
          %270 = sbr.rel (%p268) target = $region36
        $region35: #{tpu_custom_call.1} parent=15 // pred_region
          %p271 = scmp.lt.s32.totalorder %s16, 1
          %s272 = scalar_select %p271, %s16, 1
          %s273 = smul.addr %s272, 2
          %s274 = scalar_lea.vmem %s4, %s273
        $region36: #{tpu_custom_call.1} parent=15 // pred_fallthru
          _
        // Predicated region
        $region37: #{tpu_custom_call.1} parent=15 // pred_check
          %p275 = pneg %p166
        $region38: #{tpu_custom_call.1} parent=15 // pred_check_branch
          %277 = sbr.rel (%p275) target = $region40
        $region39: #{tpu_custom_call.1} parent=15 // pred_region
          %p278 = scmp.lt.s32.totalorder %s16, 1
          %s279 = scalar_select %p278, %s16, 1
          %s280 = smul.addr %s279, 4
          %s281 = scalar_lea.vmem %s5, %s280
        $region40: #{tpu_custom_call.1} parent=15 // pred_fallthru
          _
        // Predicated region
        $region41: #{tpu_custom_call.1} parent=15 // pred_check
          %p282 = pneg %p192
        $region42: #{tpu_custom_call.1} parent=15 // pred_check_branch
          %284 = sbr.rel (%p282) target = $region44
        $region43: #{tpu_custom_call.1} parent=15 // pred_region
          %p285 = scmp.lt.s32.totalorder %s16, 1
          %s286 = scalar_select %p285, %s16, 1
          %s287 = smul.addr %s286, 4
          %s288 = scalar_lea.vmem %s6, %s287
        $region44: #{tpu_custom_call.1} parent=15 // pred_fallthru
          _
      $region16: #{tpu_custom_call.1} parent=5 // pred_fallthru
        _
      %p289 = scmp.le.s32.totalorder 1, %s16
      %p290 = scmp.lt.s32.totalorder %s16, 3
      %p291 = pnand %p289, %p290
      %p292 = pneg %p291
      // Predicated region
      $region45: #{tpu_custom_call.1} parent=5 // pred_check
        _
      $region46: #{tpu_custom_call.1} parent=5 // pred_check_branch
        %294 = sbr.rel (%p291) target = $region48
      $region47: #{tpu_custom_call.1} parent=5 // pred_region
        %s295 = ssub.s32 %s16, 1
        %p296 = scmp.lt.s32.totalorder %s21, 1
        %s297 = scalar_select %p296, %s21, 1
        %s298 = scalar_lea.vmem %s0, %s297
        %p299 = pneg %p42
        %p300 = pneg %p39
        %p301 = scmp.lt.s32.totalorder %s21, 1
        %s302 = scalar_select %p301, %s21, 1
        %s303 = scalar_lea.vmem %s1, %s302
        %p304 = pneg %p68
        %p305 = pneg %p65
        %p306 = scmp.lt.s32.totalorder %s21, 1
        %s307 = scalar_select %p306, %s21, 1
        %s308 = smul.addr %s307, 4
        %s309 = scalar_lea.vmem %s2, %s308
        %p310 = pneg %p94
        %p311 = pneg %p91
        %p312 = scmp.lt.s32.totalorder %s21, 1
        %s313 = scalar_select %p312, %s21, 1
        %s314 = scalar_lea.vmem %s3, %s313
        %p315 = pneg %p120
        %p316 = pneg %p117
        %p317 = scmp.lt.s32.totalorder %s21, 1
        %s318 = scalar_select %p317, %s21, 1
        %s319 = smul.addr %s318, 2
        %s320 = scalar_lea.vmem %s4, %s319
        %p321 = pneg %p146
        %p322 = pneg %p143
        %p323 = scmp.lt.s32.totalorder %s21, 1
        %s324 = scalar_select %p323, %s21, 1
        %s325 = smul.addr %s324, 4
        %s326 = scalar_lea.vmem %s5, %s325
        %p327 = pneg %p172
        %p328 = pneg %p169
        %p329 = scmp.lt.s32.totalorder %s21, 1
        %s330 = scalar_select %p329, %s21, 1
        %s331 = smul.addr %s330, 4
        %s332 = scalar_lea.vmem %s6, %s331
        %p333 = pneg %p198
        %p334 = pneg %p195
        %p335 = pneg %p224
        %p336 = pneg %p221
        %s337 = sand.u32 %s211, 1
        %s338 = scalar_lea.sflag [#allocation3], %s337
        %s339 = sand.u32 %s211, 1
        %s340 = scalar_lea.vmem [#allocation2], %s339
        %p341 = scmp.lt.s32.totalorder %s21, 1
        %s342 = scalar_select %p341, %s21, 1
        %s343 = scalar_lea.vmem %s0, %s342
        %p344 = scmp.lt.s32.totalorder %s21, 1
        %s345 = scalar_select %p344, %s21, 1
        %s346 = scalar_lea.vmem %s1, %s345
        %p347 = scmp.lt.s32.totalorder %s21, 1
        %s348 = scalar_select %p347, %s21, 1
        %s349 = smul.addr %s348, 4
        %s350 = scalar_lea.vmem %s2, %s349
        %p351 = scmp.lt.s32.totalorder %s21, 1
        %s352 = scalar_select %p351, %s21, 1
        %s353 = scalar_lea.vmem %s3, %s352
        %p354 = scmp.lt.s32.totalorder %s21, 1
        %s355 = scalar_select %p354, %s21, 1
        %s356 = smul.addr %s355, 2
        %s357 = scalar_lea.vmem %s4, %s356
        %p358 = scmp.lt.s32.totalorder %s21, 1
        %s359 = scalar_select %p358, %s21, 1
        %s360 = smul.addr %s359, 4
        %s361 = scalar_lea.vmem %s5, %s360
        %p362 = scmp.lt.s32.totalorder %s21, 1
        %s363 = scalar_select %p362, %s21, 1
        %s364 = smul.addr %s363, 4
        %s365 = scalar_lea.vmem %s6, %s364
        %v366 = vld [vmem:[%s343] sm:$0x1]
        %v367 = vunpack.c.l.bf16 %v366
        %v368 = vld [vmem:[%s346] sm:$0x1]
        %v369 = vunpack.c.l.bf16 %v368
        %v370 = vmax.f32 %v367, 0.0
        %v371 = vmul.f32 %v367, %v369
        %v372 = vsub.f32 %v370, %v371
        %v373 = vand.u32 2147483647, %v367
        %v374 = vsub.f32 0.0, %v373
        %v375 = vmul.f32 %v374, 1.442695
        %v376 = vpow.pop %v375
        %v377 = vadd.f32 %v376, 1.0
        %v378 = vlog2.pop %v377
        %v379 = vmul.f32 %v378, 0.6931472
        %v380 = vadd.f32 %v372, %v379
        %vm381 = vcmask 253952
        %v382 = vsel %vm381, %v380, 0.0
        %383 = vadd.xlane.f32.xlu0 %v382
        %v384 = vpop.xlane.xlu0 %383
        %v385 = vrot.slane %v384, 4
        %v386 = vadd.f32 %v384, %v385
        %v387 = vrot.slane %v386, 2
        %v388 = vadd.f32 %v386, %v387
        %v389 = vrot.slane %v388, 1
        %v390 = vadd.f32 %v388, %v389
        %s391 = vtos %v390
        %v392 = vld [vmem:[%s365] sm:$0x7]
        %v393 = vcvt.s32.f32 %v392
        %vm394 = vcmp.gt.f32.partialorder %v367, 0.0
        %v395 = vsel %vm394, 1.0, 0.0
        %v396 = vsel %vm381, %v395, 0.0
        %397 = vadd.xlane.f32.xlu0 %v396
        %v398 = vpop.xlane.xlu0 %397
        %v399 = vrot.slane %v398, 4
        %v400 = vadd.f32 %v398, %v399
        %v401 = vrot.slane %v400, 2
        %v402 = vadd.f32 %v400, %v401
        %v403 = vrot.slane %v402, 1
        %v404 = vadd.f32 %v402, %v403
        %vm405 = vcmask 2048
        %v406 = vsel %vm405, %v393, 0.0
        %407 = vadd.xlane.f32.xlu0 %v406
        %v408 = vpop.xlane.xlu0 %407
        %v409 = vrot.slane %v408, 4
        %v410 = vadd.f32 %v408, %v409
        %v411 = vrot.slane %v410, 2
        %v412 = vadd.f32 %v410, %v411
        %v413 = vrot.slane %v412, 1
        %v414 = vadd.f32 %v412, %v413
        %v415 = vmul.f32 %v414, 0.5
        %v416 = vsub.f32 %v404, %v415
        %v417 = vand.u32 2147483647, %v416
        %v418 = vadd.f32 %v417, 0.0
        %s419 = vtos %v418
        %v420 = vld [vmem:[%s350] sm:$0x7]
        %v421 = vunpack.c.l.bf16 %v420
        %vm422 = vcmask 62464
        %v423 = vsel %vm422, %v421, -inf
        %v424 = vrot.slane %v423, 4
        %v425 = vmax.f32 %v423, %v424
        %v426 = vrot.slane %v425, 2
        %v427 = vmax.f32 %v425, %v426
        %v428 = vrot.slane %v427, 1
        %v429 = vmax.f32 %v427, %v428
        %v430 = vsub.f32 %v421, %v429
        %v431 = vmul.f32 %v430, 1.442695
        %v432 = vpow.pop %v431
        %v433 = vsel %vm422, %v432, 0.0
        %v434 = vrot.slane %v433, 4
        %v435 = vadd.f32 %v433, %v434
        %v436 = vrot.slane %v435, 2
        %v437 = vadd.f32 %v435, %v436
        %v438 = vrot.slane %v437, 1
        %v439 = vadd.f32 %v437, %v438
        %v440 = vlog2.pop %v439
        %v441 = vmul.f32 %v440, 0.6931472
        %v442 = vadd.f32 %v441, %v429
        %v443 = vlaneseq
        %v444 = vshrl.u32 %v443, 7
        %v445 = vld [vmem:[%s353] sm:$0x1]
        %v446 = vlaneseq
        %v447 = vshrl.u32 %v446, 7
        %v448 = vsub.s32 0, %v447
        %v449 = vrot.slane %v445, %v448
        %vm450 = vcmp.eq.s32.totalorder %v444, %v449
        %v451 = vsel %vm450, %v421, 0.0
        %v452 = vsel %vm422, %v451, 0.0
        %453 = vadd.xlane.f32.xlu0 %v452
        %v454 = vpop.xlane.xlu0 %453
        %v455 = vrot.slane %v454, 4
        %v456 = vadd.f32 %v454, %v455
        %v457 = vrot.slane %v456, 2
        %v458 = vadd.f32 %v456, %v457
        %v459 = vrot.slane %v458, 1
        %v460 = vadd.f32 %v458, %v459
        %s461 = vtos %v460
        %vm462 = vcmask 57344
        %v463 = vsel %vm462, %v442, 0.0
        %464 = vadd.xlane.f32.xlu0 %v463
        %v465 = vpop.xlane.xlu0 %464
        %v466 = vrot.slane %v465, 4
        %v467 = vadd.f32 %v465, %v466
        %v468 = vrot.slane %v467, 2
        %v469 = vadd.f32 %v467, %v468
        %v470 = vrot.slane %v469, 1
        %v471 = vadd.f32 %v469, %v470
        %s472 = vtos %v471
        %s473 = ssub.f32 %s472, %s461
        %v474 = vld [vmem:[%s357] sm:$0x3]
        %v475 = vunpack.c.l.bf16 %v474
        %v476 = vld [vmem:[%s361] sm:$0x7]
        %v477 = vlaneseq
        %v478 = vand.u32 %v477, 127
        %479 = vset.pattern.permute.xlu0 0
        %480 = vperm.xlu0 %479, %v392
        %v481 = vpop.permute.xlu0 %480
        %vm482 = vcmp.lt.s32.totalorder %v478, %v481
        %v483 = vsel %vm482, 1, 0
        %v484 = vcvt.s32.f32 %v483
        %v485 = vsub.f32 %v475, %v476
        %v486 = vand.u32 2147483647, %v485
        %v487 = vmul.f32 %v486, %v484
        %vm488 = vcmask 59392
        %v489 = vsel %vm488, %v487, 0.0
        %490 = vadd.xlane.f32.xlu0 %v489
        %v491 = vpop.xlane.xlu0 %490
        %v492 = vrot.slane %v491, 4
        %v493 = vadd.f32 %v491, %v492
        %v494 = vrot.slane %v493, 2
        %v495 = vadd.f32 %v493, %v494
        %v496 = vrot.slane %v495, 1
        %v497 = vadd.f32 %v495, %v496
        %s498 = vtos %v497
        %v499 = vsel %vm488, %v484, 0.0
        %500 = vadd.xlane.f32.xlu0 %v499
        %v501 = vpop.xlane.xlu0 %500
        %v502 = vrot.slane %v501, 4
        %v503 = vadd.f32 %v501, %v502
        %v504 = vrot.slane %v503, 2
        %v505 = vadd.f32 %v503, %v504
        %v506 = vrot.slane %v505, 1
        %v507 = vadd.f32 %v505, %v506
        %s508 = vtos %v507
        %vm509 = vcmp.eq.s32.totalorder %v478, 0
        %v510 = vstv %s391
        %v511 = vsel %vm509, %v510, 0.0
        %vm512 = vcmp.eq.s32.totalorder %v478, 1
        %v513 = vstv %s473
        %v514 = vsel %vm512, %v513, 0.0
        %v515 = vadd.f32 %v511, %v514
        %vm516 = vcmp.eq.s32.totalorder %v478, 2
        %v517 = vstv %s419
        %v518 = vsel %vm516, %v517, 0.0
        %v519 = vadd.f32 %v515, %v518
        %vm520 = vcmp.eq.s32.totalorder %v478, 3
        %v521 = vstv %s498
        %v522 = vsel %vm520, %v521, 0.0
        %v523 = vadd.f32 %v519, %v522
        %vm524 = vcmp.eq.s32.totalorder %v478, 4
        %v525 = vstv %s508
        %v526 = vsel %vm524, %v525, 0.0
        %v527 = vadd.f32 %v523, %v526
        %528 = vst [vmem:[%s340] sm:$0x1] %v527
        %s529 = sand.u32 %s211, 1
        %s530 = scalar_lea.sflag [#allocation3], %s529
        %s531 = sand.u32 %s211, 1
        %s532 = scalar_lea.vmem [#allocation2], %s531
        // Predicated region
        $region49: #{tpu_custom_call.1} parent=47 // pred_check
          %p533 = pneg %p221
        $region50: #{tpu_custom_call.1} parent=47 // pred_check_branch
          %535 = sbr.rel (%p533) target = $region52
        $region51: #{tpu_custom_call.1} parent=47 // pred_region
          %s537 = ssub.s32 16, 16
          %538 = vsyncadd %s530, %s537
          %s539 = smul.addr %s21, 16
          %s540 = scalar_lea.hbm %s7, %s539
          %s542 = sshll.u32 %s532, 4
          %s543 = int_to_ptr.vmem [resolvable:$true] %s542
          %545 = dma.vmem_to_hbm [thread:$0]  %s543, 16, %s540, %s530
        $region52: #{tpu_custom_call.1} parent=47 // pred_fallthru
          _
      $region48: #{tpu_custom_call.1} parent=5 // pred_fallthru
        _
      %p546 = scmp.le.s32.totalorder 2, %s16
      // Predicated region
      $region53: #{tpu_custom_call.1} parent=5 // pred_check
        %p547 = pneg %p546
      $region54: #{tpu_custom_call.1} parent=5 // pred_check_branch
        %549 = sbr.rel (%p547) target = $region56
      $region55: #{tpu_custom_call.1} parent=5 // pred_region
        %s550 = ssub.s32 %s16, 2
        // Predicated region
        $region57: #{tpu_custom_call.1} parent=55 // pred_check
          %p551 = pneg %p227
        $region58: #{tpu_custom_call.1} parent=55 // pred_check_branch
          %553 = sbr.rel (%p551) target = $region60
        $region59: #{tpu_custom_call.1} parent=55 // pred_region
          %s554 = sand.u32 %s212, 1
          %s555 = scalar_lea.sflag [#allocation3], %s554
          %s556 = sand.u32 %s212, 1
          %s557 = scalar_lea.vmem [#allocation2], %s556
          %558 = dma.done %s555, 16
        $region60: #{tpu_custom_call.1} parent=55 // pred_fallthru
          _
      $region56: #{tpu_custom_call.1} parent=5 // pred_fallthru
        _
    $region6: #{tpu_custom_call.1} parent=1 // loop_footer
      %s20 = sadd.s32 1, %s16
    $region7: #{tpu_custom_call.1} parent=1 // loop_footer_branch
      %15 = sbr.rel target = $region3
    $region8: #{tpu_custom_call.1} parent=1 // loop_exit
      _
    %559 = vsyncpa [#allocation3], 1
    %s560 = scalar_lea.sflag [#allocation3], 1
    %561 = vsyncpa %s560, 1

</llo_original>
